<compile_context>
chip_gen: v5e
topology: v5e:2x2
jax: 0.10.0
libtpu: 0.0.40
codegen_flags: <defaults>
</compile_context>

<pallas_src>
import functools

import jax
import jax.numpy as jnp
from jax.experimental import pallas as pl
from jax.experimental.pallas import tpu as pltpu


_LEAKY_SLOPE = 0.01  # F.leaky_relu default negative_slope


def _leaky_relu(x):
    return jnp.where(x >= 0, x, _LEAKY_SLOPE * x)


def _mpnn_block_kernel(
    x_ref,          # (N, D)      raw node features of one (batch, window) graph
    eye_ref,        # (N, N)      identity
    mask_ref,       # (N, N)      pre_relation decay mask (Mask_Matrix)
    pool_ref,       # (ns, N)     mean-pool matrix (unused for 'max')
    wmap_ref,       # (D, D)      graph-construction Linear weight, pre-transposed
    bmap_ref,       # (1, D)
    bn_scale_ref,   # (1, D)      folded eval-mode BatchNorm1d(input_dim)
    bn_shift_ref,   # (1, D)
    wtheta_ref,     # (D, Dout)   MPNN theta Linear weight, pre-transposed
    btheta_ref,     # (1, Dout)
    bn1_scale_ref,  # (1, Dout)   folded eval-mode BatchNorm1d(output_dim)
    bn1_shift_ref,  # (1, Dout)
    out_ref,        # (ns, Dout)  pooled output for this graph
    *,
    time_window_size: int,
    num_sensors: int,
    pool_choice: str,
):
    x = x_ref[...]
    eye = eye_ref[...]

    # --- Dot_Graph_Construction_weights --------------------------------------
    h = jnp.dot(x, wmap_ref[...], preferred_element_type=jnp.float32) + bmap_ref[...]
    # S = H @ H^T (contract the feature dim of both operands; no explicit transpose).
    s = jax.lax.dot_general(
        h, h, dimension_numbers=(((1,), (1,)), ((), ())),
        preferred_element_type=jnp.float32)
    s = _leaky_relu(s - eye * 1e8)
    s_max = jnp.max(s, axis=-1, keepdims=True)
    e = jnp.exp(s - s_max)
    adj = e / jnp.sum(e, axis=-1, keepdims=True)
    adj = (adj + eye) * mask_ref[...]            # * pre_relation

    # --- BatchNorm1d(input_dim), eval mode folded to scale/shift --------------
    xn = x * bn_scale_ref[...] + bn_shift_ref[...]

    # --- MPNN_mk_v2 (k = 1): leaky_relu(BN(theta(A @ X))) ---------------------
    m = jnp.dot(adj, xn, preferred_element_type=jnp.float32)
    o = jnp.dot(m, wtheta_ref[...], preferred_element_type=jnp.float32) + btheta_ref[...]
    o = _leaky_relu(o * bn1_scale_ref[...] + bn1_shift_ref[...])     # (N, Dout)

    # --- temporal pooling over the window axis (node = t*num_sensors + n) -----
    if pool_choice == "mean":
        # Mean pooling as a tiny MXU matmul with a constant (ns, N) matrix.
        pooled = jnp.dot(pool_ref[...], o, preferred_element_type=jnp.float32)
    elif pool_choice == "max":
        ns = num_sensors
        pooled = o[0:ns, :]
        for t in range(1, time_window_size):
            pooled = jnp.maximum(pooled, o[t * ns:(t + 1) * ns, :])
    else:
        raise ValueError("pool_choice must be 'mean' or 'max'")

    out_ref[...] = pooled.astype(out_ref.dtype)


def graph_convpool_mpnn_block_v6_forward(
    x, params, *, time_window_size, stride, decay, pool_choice, bn_eps=1e-5):
    """Eval-mode forward of GraphConvpoolMPNN_block_v6.

    x: [bs, time_length, num_sensors, feature_dim] float.
    params: dict with PyTorch-layout weights:
      map_w [D,D], map_b [D], bn_{gamma,beta,mean,var} [D],
      theta_w [Dout,D], theta_b [Dout], bn1_{gamma,beta,mean,var} [Dout].
    Returns [bs, num_windows, num_sensors, Dout].
    """
    x = x.astype(jnp.float32)
    bs, time_length, num_sensors, feat = x.shape
    num_windows = (time_length - time_window_size) // stride + 1
    n_nodes = time_window_size * num_sensors
    out_dim = params["theta_w"].shape[0]
    num_graphs = bs * num_windows

    # --- Conv_GraphST + transpose/reshape: pure indexing glue (XLA fuses it). --
    t_idx = (jnp.arange(num_windows)[:, None] * stride
             + jnp.arange(time_window_size)[None, :])
    windows = x[:, t_idx]                                   # [bs, nw, T, ns, D]
    x_graphs = windows.reshape(num_graphs, n_nodes, feat)   # node = t*ns + n

    # --- Mask_Matrix(num_sensors, time_window_size, decay): decay^|ti - tj| ---
    ti = jnp.arange(time_window_size, dtype=jnp.float32)
    block = jnp.power(jnp.float32(decay), jnp.abs(ti[:, None] - ti[None, :]))
    mask = jnp.kron(block, jnp.ones((num_sensors, num_sensors), jnp.float32))

    eye = jnp.eye(n_nodes, dtype=jnp.float32)

    # Mean-pool matrix: pool_mat[n, t*ns + n] = 1/T.
    pool_mat = (jnp.tile(jnp.eye(num_sensors, dtype=jnp.float32),
                         (1, time_window_size)) / float(time_window_size))

    # Fold eval-mode BatchNorm1d into per-channel scale/shift rows.
    # TODO(synk): training-mode BatchNorm (batch statistics) not implemented.
    bn_scale = params["bn_gamma"] / jnp.sqrt(params["bn_var"] + bn_eps)
    bn_shift = params["bn_beta"] - params["bn_mean"] * bn_scale
    bn1_scale = params["bn1_gamma"] / jnp.sqrt(params["bn1_var"] + bn_eps)
    bn1_shift = params["bn1_beta"] - params["bn1_mean"] * bn1_scale

    row = lambda v: jnp.asarray(v, jnp.float32).reshape(1, -1)
    wmap_t = jnp.asarray(params["map_w"], jnp.float32).T      # so kernel does x @ W^T
    wtheta_t = jnp.asarray(params["theta_w"], jnp.float32).T

    # Constant (VMEM-resident) operands: block index never changes -> no re-DMA.
    const2d = lambda r, c: pl.BlockSpec((r, c), lambda g: (0, 0))

    kernel = functools.partial(
        _mpnn_block_kernel,
        time_window_size=time_window_size,
        num_sensors=num_sensors,
        pool_choice=pool_choice,
    )

    pooled = pl.pallas_call(
        kernel,
        out_shape=jax.ShapeDtypeStruct((num_graphs, num_sensors, out_dim),
                                       jnp.float32),
        grid_spec=pltpu.PrefetchScalarGridSpec(
            num_scalar_prefetch=0,
            grid=(num_graphs,),                     # even length -> shards on v7x megacore
            in_specs=[
                # per-graph node features; leading dim squeezed -> kernel sees 2D
                pl.BlockSpec((None, n_nodes, feat), lambda g: (g, 0, 0)),
                const2d(n_nodes, n_nodes),          # eye
                const2d(n_nodes, n_nodes),          # pre_relation mask
                const2d(num_sensors, n_nodes),      # mean-pool matrix
                const2d(feat, feat),                # wmap (transposed)
                const2d(1, feat),                   # bmap
                const2d(1, feat),                   # bn scale
                const2d(1, feat),                   # bn shift
                const2d(feat, out_dim),             # wtheta (transposed)
                const2d(1, out_dim),                # btheta
                const2d(1, out_dim),                # bn1 scale
                const2d(1, out_dim),                # bn1 shift
            ],
            out_specs=pl.BlockSpec((None, num_sensors, out_dim),
                                   lambda g: (g, 0, 0)),
        ),
        compiler_params=pltpu.CompilerParams(
            dimension_semantics=("parallel",),
            vmem_limit_bytes=32 * 1024 * 1024,      # safe on v5e/v6e/v7x
        ),
    )(
        x_graphs, eye, mask, pool_mat,
        wmap_t, row(params["map_b"]),
        row(bn_scale), row(bn_shift),
        wtheta_t, row(params["theta_b"]),
        row(bn1_scale), row(bn1_shift),
    )

    return pooled.reshape(bs, num_windows, num_sensors, out_dim)


def _reference_forward(x, params, *, time_window_size, stride, decay,
                       pool_choice, bn_eps=1e-5):
    """Pure-JAX reference mirroring the PyTorch forward (eval mode)."""
    x = x.astype(jnp.float32)
    bs, time_length, num_sensors, feat = x.shape
    nw = (time_length - time_window_size) // stride + 1
    n_nodes = time_window_size * num_sensors
    hp = jax.lax.Precision.HIGHEST

    t_idx = (jnp.arange(nw)[:, None] * stride
             + jnp.arange(time_window_size)[None, :])
    xg = x[:, t_idx].reshape(bs * nw, n_nodes, feat)

    h = jnp.einsum("gnd,ed->gne", xg, params["map_w"], precision=hp) + params["map_b"]
    s = jnp.einsum("gnd,gmd->gnm", h, h, precision=hp)
    eye = jnp.eye(n_nodes, dtype=jnp.float32)
    s = s - eye * 1e8
    s = jnp.where(s >= 0, s, _LEAKY_SLOPE * s)
    a = jax.nn.softmax(s, axis=-1) + eye

    ti = jnp.arange(time_window_size, dtype=jnp.float32)
    block = jnp.power(jnp.float32(decay), jnp.abs(ti[:, None] - ti[None, :]))
    mask = jnp.kron(block, jnp.ones((num_sensors, num_sensors), jnp.float32))
    a = a * mask

    bn_scale = params["bn_gamma"] / jnp.sqrt(params["bn_var"] + bn_eps)
    bn_shift = params["bn_beta"] - params["bn_mean"] * bn_scale
    xn = xg * bn_scale + bn_shift

    m = jnp.einsum("gnm,gmd->gnd", a, xn, precision=hp)
    o = jnp.einsum("gnd,od->gno", m, params["theta_w"], precision=hp) + params["theta_b"]
    bn1_scale = params["bn1_gamma"] / jnp.sqrt(params["bn1_var"] + bn_eps)
    bn1_shift = params["bn1_beta"] - params["bn1_mean"] * bn1_scale
    o = o * bn1_scale + bn1_shift
    o = jnp.where(o >= 0, o, _LEAKY_SLOPE * o)

    o = o.reshape(bs, nw, time_window_size, num_sensors, -1)
    if pool_choice == "mean":
        return jnp.mean(o, axis=2)
    return jnp.max(o, axis=2)


if __name__ == "__main__":
    # Small shapes consistent with the module:
    # batch=2, time_length=8, num_sensors=4, input_dim=32,
    # time_window_size=4, stride=2, decay=0.7, output_dim=32, pool='mean'.
    bs, time_length, num_sensors, feat = 2, 8, 4, 32
    time_window_size, stride, decay = 4, 2, 0.7
    out_dim = 32
    pool_choice = "mean"

    key = jax.random.PRNGKey(0)
    ks = jax.random.split(key, 13)
    x = jax.random.normal(ks[0], (bs, time_length, num_sensors, feat), jnp.float32)

    params = {
        "map_w":     0.1 * jax.random.normal(ks[1], (feat, feat), jnp.float32),
        "map_b":     0.1 * jax.random.normal(ks[2], (feat,), jnp.float32),
        "bn_gamma":  1.0 + 0.1 * jax.random.normal(ks[3], (feat,), jnp.float32),
        "bn_beta":   0.1 * jax.random.normal(ks[4], (feat,), jnp.float32),
        "bn_mean":   0.1 * jax.random.normal(ks[5], (feat,), jnp.float32),
        "bn_var":    1.0 + 0.1 * jnp.abs(jax.random.normal(ks[6], (feat,), jnp.float32)),
        "theta_w":   0.1 * jax.random.normal(ks[7], (out_dim, feat), jnp.float32),
        "theta_b":   0.1 * jax.random.normal(ks[8], (out_dim,), jnp.float32),
        "bn1_gamma": 1.0 + 0.1 * jax.random.normal(ks[9], (out_dim,), jnp.float32),
        "bn1_beta":  0.1 * jax.random.normal(ks[10], (out_dim,), jnp.float32),
        "bn1_mean":  0.1 * jax.random.normal(ks[11], (out_dim,), jnp.float32),
        "bn1_var":   1.0 + 0.1 * jnp.abs(jax.random.normal(ks[12], (out_dim,), jnp.float32)),
    }

    out = graph_convpool_mpnn_block_v6_forward(
        x, params,
        time_window_size=time_window_size, stride=stride,
        decay=decay, pool_choice=pool_choice)
    out = jax.block_until_ready(out)

    num_windows = (time_length - time_window_size) // stride + 1
    assert out.shape == (bs, num_windows, num_sensors, out_dim), out.shape

    ref = _reference_forward(
        x, params,
        time_window_size=time_window_size, stride=stride,
        decay=decay, pool_choice=pool_choice)
    max_err = float(jnp.max(jnp.abs(out - ref)))
    assert jnp.allclose(out, ref, atol=1e-2, rtol=1e-2), f"mismatch, max_err={max_err}"

    print("KERNEL_OK")
</pallas_src>

<mosaic_0001>
module attributes {stable_mosaic.version = 11 : i64} {
  func.func @_mpnn_block_kernel(%arg0: i32, %arg1: memref<1x16x32xf32, #tpu.memory_space<vmem>>, %arg2: memref<16x16xf32, #tpu.memory_space<vmem>>, %arg3: memref<16x16xf32, #tpu.memory_space<vmem>>, %arg4: memref<4x16xf32, #tpu.memory_space<vmem>>, %arg5: memref<32x32xf32, #tpu.memory_space<vmem>>, %arg6: memref<1x32xf32, #tpu.memory_space<vmem>>, %arg7: memref<1x32xf32, #tpu.memory_space<vmem>>, %arg8: memref<1x32xf32, #tpu.memory_space<vmem>>, %arg9: memref<32x32xf32, #tpu.memory_space<vmem>>, %arg10: memref<1x32xf32, #tpu.memory_space<vmem>>, %arg11: memref<1x32xf32, #tpu.memory_space<vmem>>, %arg12: memref<1x32xf32, #tpu.memory_space<vmem>>, %arg13: memref<1x4x32xf32, #tpu.memory_space<vmem>>) attributes {dimension_semantics = [#tpu.dimension_semantics<parallel>], iteration_bounds = array<i64: 6>, scalar_prefetch = 0 : i64, scratch_operands = 0 : i64, tpu.core_type = #tpu.core_type<tc>, window_params = [{transform_indices = @transform_0, window_bounds = array<i64: 1, 16, 32>}, {pipeline_mode = #tpu.pipeline_mode<synchronous>, transform_indices = @transform_1, window_bounds = array<i64: 16, 16>}, {pipeline_mode = #tpu.pipeline_mode<synchronous>, transform_indices = @transform_2, window_bounds = array<i64: 16, 16>}, {pipeline_mode = #tpu.pipeline_mode<synchronous>, transform_indices = @transform_3, window_bounds = array<i64: 4, 16>}, {pipeline_mode = #tpu.pipeline_mode<synchronous>, transform_indices = @transform_4, window_bounds = array<i64: 32, 32>}, {pipeline_mode = #tpu.pipeline_mode<synchronous>, transform_indices = @transform_5, window_bounds = array<i64: 1, 32>}, {pipeline_mode = #tpu.pipeline_mode<synchronous>, transform_indices = @transform_6, window_bounds = array<i64: 1, 32>}, {pipeline_mode = #tpu.pipeline_mode<synchronous>, transform_indices = @transform_7, window_bounds = array<i64: 1, 32>}, {pipeline_mode = #tpu.pipeline_mode<synchronous>, transform_indices = @transform_8, window_bounds = array<i64: 32, 32>}, {pipeline_mode = #tpu.pipeline_mode<synchronous>, transform_indices = @transform_9, window_bounds = array<i64: 1, 32>}, {pipeline_mode = #tpu.pipeline_mode<synchronous>, transform_indices = @transform_10, window_bounds = array<i64: 1, 32>}, {pipeline_mode = #tpu.pipeline_mode<synchronous>, transform_indices = @transform_11, window_bounds = array<i64: 1, 32>}, {transform_indices = @transform_12, window_bounds = array<i64: 1, 4, 32>}]} {
    %c0 = arith.constant 0 : index
    %c0_0 = arith.constant 0 : index
    %c0_1 = arith.constant 0 : index
    %0 = vector.load %arg1[%c0, %c0_0, %c0_1] : memref<1x16x32xf32, #tpu.memory_space<vmem>>, vector<1x16x32xf32>
    %1 = vector.shape_cast %0 : vector<1x16x32xf32> to vector<16x32xf32>
    %c0_2 = arith.constant 0 : index
    %c0_3 = arith.constant 0 : index
    %2 = vector.load %arg2[%c0_2, %c0_3] : memref<16x16xf32, #tpu.memory_space<vmem>>, vector<16x16xf32>
    %c0_4 = arith.constant 0 : index
    %c0_5 = arith.constant 0 : index
    %3 = vector.load %arg5[%c0_4, %c0_5] : memref<32x32xf32, #tpu.memory_space<vmem>>, vector<32x32xf32>
    %cst = arith.constant dense<0.000000e+00> : vector<16x32xf32>
    %4 = tpu.matmul %1, %3, %cst {dimension_numbers = #tpu.dot_dimension_numbers<[1], [0], [0], [1], [0, 0, 1, 1], [], []>} : vector<16x32xf32>, vector<32x32xf32>, vector<16x32xf32> -> vector<16x32xf32>
    %c0_6 = arith.constant 0 : index
    %c0_7 = arith.constant 0 : index
    %5 = vector.load %arg6[%c0_6, %c0_7] : memref<1x32xf32, #tpu.memory_space<vmem>>, vector<1x32xf32>
    %6 = vector.broadcast %5 : vector<1x32xf32> to vector<16x32xf32>
    %7 = arith.addf %4, %6 : vector<16x32xf32>
    %cst_8 = arith.constant dense<0.000000e+00> : vector<16x16xf32>
    %8 = tpu.matmul %7, %7, %cst_8 {dimension_numbers = #tpu.dot_dimension_numbers<[1], [1], [0], [0], [0, 0, 1, 0], [], []>} : vector<16x32xf32>, vector<16x32xf32>, vector<16x16xf32> -> vector<16x16xf32>
    %cst_9 = arith.constant 1.000000e+08 : f32
    %9 = vector.broadcast %cst_9 : f32 to vector<16x16xf32>
    %10 = arith.mulf %2, %9 : vector<16x16xf32>
    %11 = arith.subf %8, %10 : vector<16x16xf32>
    %cst_10 = arith.constant 0.000000e+00 : f32
    %12 = vector.broadcast %cst_10 : f32 to vector<16x16xf32>
    %13 = arith.cmpf oge, %11, %12 : vector<16x16xf32>
    %cst_11 = arith.constant 0.00999999977 : f32
    %14 = vector.broadcast %cst_11 : f32 to vector<16x16xf32>
    %15 = arith.mulf %14, %11 : vector<16x16xf32>
    %16 = arith.select %13, %11, %15 : vector<16x16xi1>, vector<16x16xf32>
    %cst_12 = arith.constant dense<0xFF800000> : vector<16xf32>
    %17 = vector.multi_reduction <maximumf>, %16, %cst_12 [1] : vector<16x16xf32> to vector<16xf32>
    %18 = vector.shape_cast %17 : vector<16xf32> to vector<16x1xf32>
    %19 = vector.broadcast %18 : vector<16x1xf32> to vector<16x16xf32>
    %20 = arith.subf %16, %19 : vector<16x16xf32>
    %21 = math.exp %20 : vector<16x16xf32>
    %cst_13 = arith.constant dense<0.000000e+00> : vector<16xf32>
    %22 = vector.multi_reduction <add>, %21, %cst_13 [1] : vector<16x16xf32> to vector<16xf32>
    %23 = vector.shape_cast %22 : vector<16xf32> to vector<16x1xf32>
    %24 = vector.broadcast %23 : vector<16x1xf32> to vector<16x16xf32>
    %25 = arith.divf %21, %24 : vector<16x16xf32>
    %26 = arith.addf %25, %2 : vector<16x16xf32>
    %c0_14 = arith.constant 0 : index
    %c0_15 = arith.constant 0 : index
    %27 = vector.load %arg3[%c0_14, %c0_15] : memref<16x16xf32, #tpu.memory_space<vmem>>, vector<16x16xf32>
    %28 = arith.mulf %26, %27 : vector<16x16xf32>
    %c0_16 = arith.constant 0 : index
    %c0_17 = arith.constant 0 : index
    %29 = vector.load %arg7[%c0_16, %c0_17] : memref<1x32xf32, #tpu.memory_space<vmem>>, vector<1x32xf32>
    %30 = vector.broadcast %29 : vector<1x32xf32> to vector<16x32xf32>
    %31 = arith.mulf %1, %30 : vector<16x32xf32>
    %c0_18 = arith.constant 0 : index
    %c0_19 = arith.constant 0 : index
    %32 = vector.load %arg8[%c0_18, %c0_19] : memref<1x32xf32, #tpu.memory_space<vmem>>, vector<1x32xf32>
    %33 = vector.broadcast %32 : vector<1x32xf32> to vector<16x32xf32>
    %34 = arith.addf %31, %33 : vector<16x32xf32>
    %cst_20 = arith.constant dense<0.000000e+00> : vector<16x32xf32>
    %35 = tpu.matmul %28, %34, %cst_20 {dimension_numbers = #tpu.dot_dimension_numbers<[1], [0], [0], [1], [0, 0, 1, 1], [], []>} : vector<16x16xf32>, vector<16x32xf32>, vector<16x32xf32> -> vector<16x32xf32>
    %c0_21 = arith.constant 0 : index
    %c0_22 = arith.constant 0 : index
    %36 = vector.load %arg9[%c0_21, %c0_22] : memref<32x32xf32, #tpu.memory_space<vmem>>, vector<32x32xf32>
    %cst_23 = arith.constant dense<0.000000e+00> : vector<16x32xf32>
    %37 = tpu.matmul %35, %36, %cst_23 {dimension_numbers = #tpu.dot_dimension_numbers<[1], [0], [0], [1], [0, 0, 1, 1], [], []>} : vector<16x32xf32>, vector<32x32xf32>, vector<16x32xf32> -> vector<16x32xf32>
    %c0_24 = arith.constant 0 : index
    %c0_25 = arith.constant 0 : index
    %38 = vector.load %arg10[%c0_24, %c0_25] : memref<1x32xf32, #tpu.memory_space<vmem>>, vector<1x32xf32>
    %39 = vector.broadcast %38 : vector<1x32xf32> to vector<16x32xf32>
    %40 = arith.addf %37, %39 : vector<16x32xf32>
    %c0_26 = arith.constant 0 : index
    %c0_27 = arith.constant 0 : index
    %41 = vector.load %arg11[%c0_26, %c0_27] : memref<1x32xf32, #tpu.memory_space<vmem>>, vector<1x32xf32>
    %42 = vector.broadcast %41 : vector<1x32xf32> to vector<16x32xf32>
    %43 = arith.mulf %40, %42 : vector<16x32xf32>
    %c0_28 = arith.constant 0 : index
    %c0_29 = arith.constant 0 : index
    %44 = vector.load %arg12[%c0_28, %c0_29] : memref<1x32xf32, #tpu.memory_space<vmem>>, vector<1x32xf32>
    %45 = vector.broadcast %44 : vector<1x32xf32> to vector<16x32xf32>
    %46 = arith.addf %43, %45 : vector<16x32xf32>
    %cst_30 = arith.constant 0.000000e+00 : f32
    %47 = vector.broadcast %cst_30 : f32 to vector<16x32xf32>
    %48 = arith.cmpf oge, %46, %47 : vector<16x32xf32>
    %cst_31 = arith.constant 0.00999999977 : f32
    %49 = vector.broadcast %cst_31 : f32 to vector<16x32xf32>
    %50 = arith.mulf %49, %46 : vector<16x32xf32>
    %51 = arith.select %48, %46, %50 : vector<16x32xi1>, vector<16x32xf32>
    %c0_32 = arith.constant 0 : index
    %c0_33 = arith.constant 0 : index
    %52 = vector.load %arg4[%c0_32, %c0_33] : memref<4x16xf32, #tpu.memory_space<vmem>>, vector<4x16xf32>
    %cst_34 = arith.constant dense<0.000000e+00> : vector<4x32xf32>
    %53 = tpu.matmul %52, %51, %cst_34 {dimension_numbers = #tpu.dot_dimension_numbers<[1], [0], [0], [1], [0, 0, 1, 1], [], []>} : vector<4x16xf32>, vector<16x32xf32>, vector<4x32xf32> -> vector<4x32xf32>
    %c0_35 = arith.constant 0 : index
    %c0_36 = arith.constant 0 : index
    %c0_37 = arith.constant 0 : index
    %54 = vector.load %arg13[%c0_35, %c0_36, %c0_37] : memref<1x4x32xf32, #tpu.memory_space<vmem>>, vector<1x4x32xf32>
    %55 = vector.shape_cast %54 : vector<1x4x32xf32> to vector<4x32xf32>
    %56 = vector.shape_cast %53 : vector<4x32xf32> to vector<1x4x32xf32>
    tpu.vector_store %arg13[%c0_35, %c0_36, %c0_37], %56 {strides = array<i32>} : memref<1x4x32xf32, #tpu.memory_space<vmem>>, vector<1x4x32xf32>,
    return
  }
  func.func @transform_0(%arg0: i32) -> (i32, i32, i32) {
    %c0_i32 = arith.constant 0 : i32
    %c0_i32_0 = arith.constant 0 : i32
    %c0_i32_1 = arith.constant 0 : i32
    return %arg0, %c0_i32, %c0_i32_0 : i32, i32, i32
  }
  func.func @transform_1(%arg0: i32) -> (i32, i32) {
    %c0_i32 = arith.constant 0 : i32
    %c0_i32_0 = arith.constant 0 : i32
    %c0_i32_1 = arith.constant 0 : i32
    return %c0_i32, %c0_i32_0 : i32, i32
  }
  func.func @transform_2(%arg0: i32) -> (i32, i32) {
    %c0_i32 = arith.constant 0 : i32
    %c0_i32_0 = arith.constant 0 : i32
    %c0_i32_1 = arith.constant 0 : i32
    return %c0_i32, %c0_i32_0 : i32, i32
  }
  func.func @transform_3(%arg0: i32) -> (i32, i32) {
    %c0_i32 = arith.constant 0 : i32
    %c0_i32_0 = arith.constant 0 : i32
    %c0_i32_1 = arith.constant 0 : i32
    return %c0_i32, %c0_i32_0 : i32, i32
  }
  func.func @transform_4(%arg0: i32) -> (i32, i32) {
    %c0_i32 = arith.constant 0 : i32
    %c0_i32_0 = arith.constant 0 : i32
    %c0_i32_1 = arith.constant 0 : i32
    return %c0_i32, %c0_i32_0 : i32, i32
  }
  func.func @transform_5(%arg0: i32) -> (i32, i32) {
    %c0_i32 = arith.constant 0 : i32
    %c0_i32_0 = arith.constant 0 : i32
    %c0_i32_1 = arith.constant 0 : i32
    return %c0_i32, %c0_i32_0 : i32, i32
  }
  func.func @transform_6(%arg0: i32) -> (i32, i32) {
    %c0_i32 = arith.constant 0 : i32
    %c0_i32_0 = arith.constant 0 : i32
    %c0_i32_1 = arith.constant 0 : i32
    return %c0_i32, %c0_i32_0 : i32, i32
  }
  func.func @transform_7(%arg0: i32) -> (i32, i32) {
    %c0_i32 = arith.constant 0 : i32
    %c0_i32_0 = arith.constant 0 : i32
    %c0_i32_1 = arith.constant 0 : i32
    return %c0_i32, %c0_i32_0 : i32, i32
  }
  func.func @transform_8(%arg0: i32) -> (i32, i32) {
    %c0_i32 = arith.constant 0 : i32
    %c0_i32_0 = arith.constant 0 : i32
    %c0_i32_1 = arith.constant 0 : i32
    return %c0_i32, %c0_i32_0 : i32, i32
  }
  func.func @transform_9(%arg0: i32) -> (i32, i32) {
    %c0_i32 = arith.constant 0 : i32
    %c0_i32_0 = arith.constant 0 : i32
    %c0_i32_1 = arith.constant 0 : i32
    return %c0_i32, %c0_i32_0 : i32, i32
  }
  func.func @transform_10(%arg0: i32) -> (i32, i32) {
    %c0_i32 = arith.constant 0 : i32
    %c0_i32_0 = arith.constant 0 : i32
    %c0_i32_1 = arith.constant 0 : i32
    return %c0_i32, %c0_i32_0 : i32, i32
  }
  func.func @transform_11(%arg0: i32) -> (i32, i32) {
    %c0_i32 = arith.constant 0 : i32
    %c0_i32_0 = arith.constant 0 : i32
    %c0_i32_1 = arith.constant 0 : i32
    return %c0_i32, %c0_i32_0 : i32, i32
  }
  func.func @transform_12(%arg0: i32) -> (i32, i32, i32) {
    %c0_i32 = arith.constant 0 : i32
    %c0_i32_0 = arith.constant 0 : i32
    %c0_i32_1 = arith.constant 0 : i32
    return %arg0, %c0_i32, %c0_i32_0 : i32, i32, i32
  }
}

</mosaic_0001>

<llo_original>
// kernel: tpu_custom_call.1
$region0: #{tpu_custom_call.1}
  #allocation0 [shape = 'u32[]', space=smem, size = 0x4, offset = 0x4, fixed_abs, tag = 'smem constant byte address 0x4 - core index']
  #allocation1 [shape = 'u32[72,128]{1,0:T(1,128)}', space=vmem, size = 0x9000, scoped, tag = 'internal scratch']
  %s0 = inlined_call_operand.hbm [shape: f32[6,16,32], index: 0, kind: input, shape index: {}]
  %s1 = inlined_call_operand.hbm [shape: f32[16,16], index: 1, kind: input, shape index: {}]
  %s2 = inlined_call_operand.hbm [shape: f32[16,16], index: 2, kind: input, shape index: {}]
  %s3 = inlined_call_operand.hbm [shape: f32[4,16], index: 3, kind: input, shape index: {}]
  %s4 = inlined_call_operand.hbm [shape: f32[32,32], index: 4, kind: input, shape index: {}]
  %s5 = inlined_call_operand.vmem [shape: f32[1,32], index: 5, kind: input, shape index: {}]
  %s6 = inlined_call_operand.vmem [shape: f32[1,32], index: 6, kind: input, shape index: {}]
  %s7 = inlined_call_operand.vmem [shape: f32[1,32], index: 7, kind: input, shape index: {}]
  %s8 = inlined_call_operand.hbm [shape: f32[32,32], index: 8, kind: input, shape index: {}]
  %s9 = inlined_call_operand.vmem [shape: f32[1,32], index: 9, kind: input, shape index: {}]
  %s10 = inlined_call_operand.vmem [shape: f32[1,32], index: 10, kind: input, shape index: {}]
  %s11 = inlined_call_operand.vmem [shape: f32[1,32], index: 11, kind: input, shape index: {}]
  %s12 = inlined_call_operand.hbm [shape: f32[6,4,32], index: 12, kind: output, shape index: {}]
  %s13 = sld [smem:[#allocation0]]
  $region105: #{tpu_custom_call.1} parent=0
    _
  %s15 = ssub.s32 1, %s13
  %s16 = scalar_select 0, %s15, %s13
  $region1: #{tpu_custom_call.1} parent=0
    #allocation2 [shape = 'u8[16384]{0}', space=vmem, size = 0x4000, scoped, tag = 'input window, operand 0']
    #allocation3 [shape = 's32[2]{0}', space=sflag, size = 0x8, scoped, tag = 'scoped memory for tpu_custom_call.1']
    #allocation4 [shape = 's32[2]{0}', space=sflag, size = 0x8, scoped, tag = 'scoped memory for tpu_custom_call.1']
    #allocation5 [shape = 'u8[8192]{0}', space=vmem, size = 0x2000, scoped, tag = 'input window, operand 1, single buffered']
    #allocation6 [shape = 's32[1]{0}', space=sflag, size = 0x4, scoped, tag = 'scoped memory for tpu_custom_call.1']
    #allocation7 [shape = 'u8[8192]{0}', space=vmem, size = 0x2000, scoped, tag = 'input window, operand 2, single buffered']
    #allocation8 [shape = 'u8[2048]{0}', space=vmem, size = 0x800, scoped, tag = 'input window, operand 3, single buffered']
    #allocation9 [shape = 's32[1]{0}', space=sflag, size = 0x4, scoped, tag = 'scoped memory for tpu_custom_call.1']
    #allocation10 [shape = 'u8[16384]{0}', space=vmem, size = 0x4000, scoped, tag = 'input window, operand 4, single buffered']
    #allocation11 [shape = 'u8[16384]{0}', space=vmem, size = 0x4000, scoped, tag = 'input window, operand 8, single buffered']
    #allocation12 [shape = 's32[1]{0}', space=sflag, size = 0x4, scoped, tag = 'scoped memory for tpu_custom_call.1']
    #allocation13 [shape = 'u8[4096]{0}', space=vmem, size = 0x1000, scoped, tag = 'output window, operand 0']
    %17 = vsyncpa [#allocation3], 0
    %s18 = scalar_lea.sflag [#allocation3], 1
    %19 = vsyncpa %s18, 0
    %20 = vsyncpa [#allocation6], 0
    %21 = vsyncpa [#allocation9], 0
    %22 = vsyncpa [#allocation12], 0
    %23 = vsyncpa [#allocation4], 0
    %s24 = scalar_lea.sflag [#allocation4], 1
    %25 = vsyncpa %s24, 0
    loop: start=0, step=1, limit=8
    $region2: #{tpu_custom_call.1} parent=1 // loop_pre_header
      _
    $region3: #{tpu_custom_call.1} parent=1 // loop_header
      %s27 = sphi 0, %s31
      %p28 = scmp.ge.s32.totalorder %s27, 8
      %s37 = sphi 0, %s39
      %s40 = sphi 0, %s37
      %s41 = sphi 0, %s40
      %s57 = sphi 0, %s41
      %s61 = sphi 0, %s61
      %s63 = sphi 0, %s61
      %s64 = sphi 0, %s63
      %s78 = sphi 0, %s64
      %s82 = sphi 0, %s82
      %s84 = sphi 0, %s82
      %s85 = sphi 0, %s84
      %s99 = sphi 0, %s85
      %s103 = sphi 0, %s103
      %s105 = sphi 0, %s103
      %s106 = sphi 0, %s105
      %s120 = sphi 0, %s106
      %s124 = sphi 0, %s124
      %s126 = sphi 0, %s124
      %s127 = sphi 0, %s126
      %s141 = sphi 0, %s127
      %s145 = sphi 0, %s145
      %s147 = sphi 0, %s145
      %s148 = sphi 0, %s147
      %s162 = sphi 0, %s148
      %s166 = sphi 0, %s166
      %s168 = sphi 0, %s166
      %s169 = sphi 0, %s168
      %s183 = sphi 0, %s169
      %s187 = sphi 0, %s187
      %s189 = sphi 0, %s187
      %s190 = sphi 0, %s189
      %s204 = sphi 0, %s190
      %s208 = sphi 0, %s208
      %s210 = sphi 0, %s208
      %s211 = sphi 0, %s210
      %s225 = sphi 0, %s211
      %s229 = sphi 0, %s229
      %s231 = sphi 0, %s229
      %s232 = sphi 0, %s231
      %s246 = sphi 0, %s232
      %s250 = sphi 0, %s250
      %s252 = sphi 0, %s250
      %s253 = sphi 0, %s252
      %s267 = sphi 0, %s253
      %s271 = sphi 0, %s271
      %s273 = sphi 0, %s271
      %s274 = sphi 0, %s273
      %s288 = sphi 0, %s274
      %s294 = sphi 0, %s296
      %s297 = sphi 0, %s294
      %s298 = sphi 0, %s297
      %s314 = sphi 0, %s298
    $region4: #{tpu_custom_call.1} parent=1 // loop_header_branch
      %30 = sbr.rel (%p28) target = $region8
    $region5: #{tpu_custom_call.1} parent=1 // loop_body
      %s32 = ssub.s32 %s27, 1
      %s33 = ssub.s32 %s27, 2
      %s34 = sadd.s32 %s27, 1
      %s35 = ssub.s32 %s27, %s34
      %p36 = scmp.eq.s32.totalorder %s35, 0
      %s38 = sadd.s32 %s37, 1
      %s39 = scalar_select %p36, %s37, %s38
      %p42 = pneg %p36
      %p43 = scmp.eq.s32.totalorder %s27, 5
      %p44 = por %p42, %p43
      %p45 = scmp.ne.s32.totalorder %s37, %s40
      %p46 = scmp.eq.s32.totalorder %s27, 0
      %p47 = por %p45, %p46
      %p48 = scmp.ne.s32.totalorder %s37, %s40
      %p49 = scmp.eq.s32.totalorder %s32, 5
      %p50 = por %p48, %p49
      %p51 = scmp.ne.s32.totalorder %s40, %s41
      %p52 = scmp.eq.s32.totalorder %s32, 0
      %p53 = por %p51, %p52
      %p54 = scmp.ne.s32.totalorder %s40, %s41
      %p55 = scmp.eq.s32.totalorder %s33, 5
      %p56 = por %p54, %p55
      %p58 = scmp.ne.s32.totalorder %s41, %s57
      %p59 = scmp.eq.s32.totalorder %s33, 0
      %p60 = por %p58, %p59
      %s62 = sadd.s32 %s61, 1
      %p65 = scmp.eq.s32.totalorder %s27, 5
      %p66 = scmp.ne.s32.totalorder %s61, %s63
      %p67 = scmp.eq.s32.totalorder %s27, 0
      %p68 = por %p66, %p67
      %p69 = scmp.ne.s32.totalorder %s61, %s63
      %p70 = scmp.eq.s32.totalorder %s32, 5
      %p71 = por %p69, %p70
      %p72 = scmp.ne.s32.totalorder %s63, %s64
      %p73 = scmp.eq.s32.totalorder %s32, 0
      %p74 = por %p72, %p73
      %p75 = scmp.ne.s32.totalorder %s63, %s64
      %p76 = scmp.eq.s32.totalorder %s33, 5
      %p77 = por %p75, %p76
      %p79 = scmp.ne.s32.totalorder %s64, %s78
      %p80 = scmp.eq.s32.totalorder %s33, 0
      %p81 = por %p79, %p80
      %s83 = sadd.s32 %s82, 1
      %p86 = scmp.eq.s32.totalorder %s27, 5
      %p87 = scmp.ne.s32.totalorder %s82, %s84
      %p88 = scmp.eq.s32.totalorder %s27, 0
      %p89 = por %p87, %p88
      %p90 = scmp.ne.s32.totalorder %s82, %s84
      %p91 = scmp.eq.s32.totalorder %s32, 5
      %p92 = por %p90, %p91
      %p93 = scmp.ne.s32.totalorder %s84, %s85
      %p94 = scmp.eq.s32.totalorder %s32, 0
      %p95 = por %p93, %p94
      %p96 = scmp.ne.s32.totalorder %s84, %s85
      %p97 = scmp.eq.s32.totalorder %s33, 5
      %p98 = por %p96, %p97
      %p100 = scmp.ne.s32.totalorder %s85, %s99
      %p101 = scmp.eq.s32.totalorder %s33, 0
      %p102 = por %p100, %p101
      %s104 = sadd.s32 %s103, 1
      %p107 = scmp.eq.s32.totalorder %s27, 5
      %p108 = scmp.ne.s32.totalorder %s103, %s105
      %p109 = scmp.eq.s32.totalorder %s27, 0
      %p110 = por %p108, %p109
      %p111 = scmp.ne.s32.totalorder %s103, %s105
      %p112 = scmp.eq.s32.totalorder %s32, 5
      %p113 = por %p111, %p112
      %p114 = scmp.ne.s32.totalorder %s105, %s106
      %p115 = scmp.eq.s32.totalorder %s32, 0
      %p116 = por %p114, %p115
      %p117 = scmp.ne.s32.totalorder %s105, %s106
      %p118 = scmp.eq.s32.totalorder %s33, 5
      %p119 = por %p117, %p118
      %p121 = scmp.ne.s32.totalorder %s106, %s120
      %p122 = scmp.eq.s32.totalorder %s33, 0
      %p123 = por %p121, %p122
      %s125 = sadd.s32 %s124, 1
      %p128 = scmp.eq.s32.totalorder %s27, 5
      %p129 = scmp.ne.s32.totalorder %s124, %s126
      %p130 = scmp.eq.s32.totalorder %s27, 0
      %p131 = por %p129, %p130
      %p132 = scmp.ne.s32.totalorder %s124, %s126
      %p133 = scmp.eq.s32.totalorder %s32, 5
      %p134 = por %p132, %p133
      %p135 = scmp.ne.s32.totalorder %s126, %s127
      %p136 = scmp.eq.s32.totalorder %s32, 0
      %p137 = por %p135, %p136
      %p138 = scmp.ne.s32.totalorder %s126, %s127
      %p139 = scmp.eq.s32.totalorder %s33, 5
      %p140 = por %p138, %p139
      %p142 = scmp.ne.s32.totalorder %s127, %s141
      %p143 = scmp.eq.s32.totalorder %s33, 0
      %p144 = por %p142, %p143
      %s146 = sadd.s32 %s145, 1
      %p149 = scmp.eq.s32.totalorder %s27, 5
      %p150 = scmp.ne.s32.totalorder %s145, %s147
      %p151 = scmp.eq.s32.totalorder %s27, 0
      %p152 = por %p150, %p151
      %p153 = scmp.ne.s32.totalorder %s145, %s147
      %p154 = scmp.eq.s32.totalorder %s32, 5
      %p155 = por %p153, %p154
      %p156 = scmp.ne.s32.totalorder %s147, %s148
      %p157 = scmp.eq.s32.totalorder %s32, 0
      %p158 = por %p156, %p157
      %p159 = scmp.ne.s32.totalorder %s147, %s148
      %p160 = scmp.eq.s32.totalorder %s33, 5
      %p161 = por %p159, %p160
      %p163 = scmp.ne.s32.totalorder %s148, %s162
      %p164 = scmp.eq.s32.totalorder %s33, 0
      %p165 = por %p163, %p164
      %s167 = sadd.s32 %s166, 1
      %p170 = scmp.eq.s32.totalorder %s27, 5
      %p171 = scmp.ne.s32.totalorder %s166, %s168
      %p172 = scmp.eq.s32.totalorder %s27, 0
      %p173 = por %p171, %p172
      %p174 = scmp.ne.s32.totalorder %s166, %s168
      %p175 = scmp.eq.s32.totalorder %s32, 5
      %p176 = por %p174, %p175
      %p177 = scmp.ne.s32.totalorder %s168, %s169
      %p178 = scmp.eq.s32.totalorder %s32, 0
      %p179 = por %p177, %p178
      %p180 = scmp.ne.s32.totalorder %s168, %s169
      %p181 = scmp.eq.s32.totalorder %s33, 5
      %p182 = por %p180, %p181
      %p184 = scmp.ne.s32.totalorder %s169, %s183
      %p185 = scmp.eq.s32.totalorder %s33, 0
      %p186 = por %p184, %p185
      %s188 = sadd.s32 %s187, 1
      %p191 = scmp.eq.s32.totalorder %s27, 5
      %p192 = scmp.ne.s32.totalorder %s187, %s189
      %p193 = scmp.eq.s32.totalorder %s27, 0
      %p194 = por %p192, %p193
      %p195 = scmp.ne.s32.totalorder %s187, %s189
      %p196 = scmp.eq.s32.totalorder %s32, 5
      %p197 = por %p195, %p196
      %p198 = scmp.ne.s32.totalorder %s189, %s190
      %p199 = scmp.eq.s32.totalorder %s32, 0
      %p200 = por %p198, %p199
      %p201 = scmp.ne.s32.totalorder %s189, %s190
      %p202 = scmp.eq.s32.totalorder %s33, 5
      %p203 = por %p201, %p202
      %p205 = scmp.ne.s32.totalorder %s190, %s204
      %p206 = scmp.eq.s32.totalorder %s33, 0
      %p207 = por %p205, %p206
      %s209 = sadd.s32 %s208, 1
      %p212 = scmp.eq.s32.totalorder %s27, 5
      %p213 = scmp.ne.s32.totalorder %s208, %s210
      %p214 = scmp.eq.s32.totalorder %s27, 0
      %p215 = por %p213, %p214
      %p216 = scmp.ne.s32.totalorder %s208, %s210
      %p217 = scmp.eq.s32.totalorder %s32, 5
      %p218 = por %p216, %p217
      %p219 = scmp.ne.s32.totalorder %s210, %s211
      %p220 = scmp.eq.s32.totalorder %s32, 0
      %p221 = por %p219, %p220
      %p222 = scmp.ne.s32.totalorder %s210, %s211
      %p223 = scmp.eq.s32.totalorder %s33, 5
      %p224 = por %p222, %p223
      %p226 = scmp.ne.s32.totalorder %s211, %s225
      %p227 = scmp.eq.s32.totalorder %s33, 0
      %p228 = por %p226, %p227
      %s230 = sadd.s32 %s229, 1
      %p233 = scmp.eq.s32.totalorder %s27, 5
      %p234 = scmp.ne.s32.totalorder %s229, %s231
      %p235 = scmp.eq.s32.totalorder %s27, 0
      %p236 = por %p234, %p235
      %p237 = scmp.ne.s32.totalorder %s229, %s231
      %p238 = scmp.eq.s32.totalorder %s32, 5
      %p239 = por %p237, %p238
      %p240 = scmp.ne.s32.totalorder %s231, %s232
      %p241 = scmp.eq.s32.totalorder %s32, 0
      %p242 = por %p240, %p241
      %p243 = scmp.ne.s32.totalorder %s231, %s232
      %p244 = scmp.eq.s32.totalorder %s33, 5
      %p245 = por %p243, %p244
      %p247 = scmp.ne.s32.totalorder %s232, %s246
      %p248 = scmp.eq.s32.totalorder %s33, 0
      %p249 = por %p247, %p248
      %s251 = sadd.s32 %s250, 1
      %p254 = scmp.eq.s32.totalorder %s27, 5
      %p255 = scmp.ne.s32.totalorder %s250, %s252
      %p256 = scmp.eq.s32.totalorder %s27, 0
      %p257 = por %p255, %p256
      %p258 = scmp.ne.s32.totalorder %s250, %s252
      %p259 = scmp.eq.s32.totalorder %s32, 5
      %p260 = por %p258, %p259
      %p261 = scmp.ne.s32.totalorder %s252, %s253
      %p262 = scmp.eq.s32.totalorder %s32, 0
      %p263 = por %p261, %p262
      %p264 = scmp.ne.s32.totalorder %s252, %s253
      %p265 = scmp.eq.s32.totalorder %s33, 5
      %p266 = por %p264, %p265
      %p268 = scmp.ne.s32.totalorder %s253, %s267
      %p269 = scmp.eq.s32.totalorder %s33, 0
      %p270 = por %p268, %p269
      %s272 = sadd.s32 %s271, 1
      %p275 = scmp.eq.s32.totalorder %s27, 5
      %p276 = scmp.ne.s32.totalorder %s271, %s273
      %p277 = scmp.eq.s32.totalorder %s27, 0
      %p278 = por %p276, %p277
      %p279 = scmp.ne.s32.totalorder %s271, %s273
      %p280 = scmp.eq.s32.totalorder %s32, 5
      %p281 = por %p279, %p280
      %p282 = scmp.ne.s32.totalorder %s273, %s274
      %p283 = scmp.eq.s32.totalorder %s32, 0
      %p284 = por %p282, %p283
      %p285 = scmp.ne.s32.totalorder %s273, %s274
      %p286 = scmp.eq.s32.totalorder %s33, 5
      %p287 = por %p285, %p286
      %p289 = scmp.ne.s32.totalorder %s274, %s288
      %p290 = scmp.eq.s32.totalorder %s33, 0
      %p291 = por %p289, %p290
      %s292 = ssub.s32 %s27, %s34
      %p293 = scmp.eq.s32.totalorder %s292, 0
      %s295 = sadd.s32 %s294, 1
      %s296 = scalar_select %p293, %s294, %s295
      %p299 = pneg %p293
      %p300 = scmp.eq.s32.totalorder %s27, 5
      %p301 = por %p299, %p300
      %p302 = scmp.ne.s32.totalorder %s294, %s297
      %p303 = scmp.eq.s32.totalorder %s27, 0
      %p304 = por %p302, %p303
      %p305 = scmp.ne.s32.totalorder %s294, %s297
      %p306 = scmp.eq.s32.totalorder %s32, 5
      %p307 = por %p305, %p306
      %p308 = scmp.ne.s32.totalorder %s297, %s298
      %p309 = scmp.eq.s32.totalorder %s32, 0
      %p310 = por %p308, %p309
      %p311 = scmp.ne.s32.totalorder %s297, %s298
      %p312 = scmp.eq.s32.totalorder %s33, 5
      %p313 = por %p311, %p312
      %p315 = scmp.ne.s32.totalorder %s298, %s314
      %p316 = scmp.eq.s32.totalorder %s33, 0
      %p317 = por %p315, %p316
      %p318 = scmp.le.s32.totalorder 1, %s27
      %p319 = scmp.lt.s32.totalorder %s27, 7
      %p320 = pnand %p318, %p319
      %p321 = pneg %p320
      // Predicated region
      $region9: #{tpu_custom_call.1} parent=5 // pred_check
        _
      $region10: #{tpu_custom_call.1} parent=5 // pred_check_branch
        %323 = sbr.rel (%p320) target = $region12
      $region11: #{tpu_custom_call.1} parent=5 // pred_region
        %s324 = ssub.s32 %s27, 1
        // Predicated region
        $region13: #{tpu_custom_call.1} parent=11 // pred_check
          %p325 = pneg %p74
        $region14: #{tpu_custom_call.1} parent=11 // pred_check_branch
          %327 = sbr.rel (%p325) target = $region16
        $region15: #{tpu_custom_call.1} parent=11 // pred_region
          %329 = vsyncadd [#allocation6], 0
          %s330 = sshll.u32 %s1, 4
          %s331 = int_to_ptr.hbm [resolvable:$true] %s330
          %s332 = sshll.u32 [#allocation5], 4
          %s333 = int_to_ptr.vmem [resolvable:$true] %s332
          %338 = dma.hbm_to_vmem [thread:$0]  %s331, 256, %s333, [#allocation6], 128, 128, 8
        $region16: #{tpu_custom_call.1} parent=11 // pred_fallthru
          _
        // Predicated region
        $region17: #{tpu_custom_call.1} parent=11 // pred_check
          %p339 = pneg %p95
        $region18: #{tpu_custom_call.1} parent=11 // pred_check_branch
          %341 = sbr.rel (%p339) target = $region20
        $region19: #{tpu_custom_call.1} parent=11 // pred_region
          %343 = vsyncadd [#allocation6], 0
          %s344 = sshll.u32 %s2, 4
          %s345 = int_to_ptr.hbm [resolvable:$true] %s344
          %s346 = sshll.u32 [#allocation7], 4
          %s347 = int_to_ptr.vmem [resolvable:$true] %s346
          %352 = dma.hbm_to_vmem [thread:$0]  %s345, 256, %s347, [#allocation6], 128, 128, 8
        $region20: #{tpu_custom_call.1} parent=11 // pred_fallthru
          _
        // Predicated region
        $region21: #{tpu_custom_call.1} parent=11 // pred_check
          %p353 = pneg %p116
        $region22: #{tpu_custom_call.1} parent=11 // pred_check_branch
          %355 = sbr.rel (%p353) target = $region24
        $region23: #{tpu_custom_call.1} parent=11 // pred_region
          %357 = vsyncadd [#allocation9], 0
          %s359 = sshll.u32 %s3, 4
          %s360 = int_to_ptr.hbm [resolvable:$true] %s359
          %s361 = sshll.u32 [#allocation8], 4
          %s362 = int_to_ptr.vmem [resolvable:$true] %s361
          %364 = dma.hbm_to_vmem [thread:$0]  %s360, 64, %s362, [#allocation9]
        $region24: #{tpu_custom_call.1} parent=11 // pred_fallthru
          _
        // Predicated region
        $region25: #{tpu_custom_call.1} parent=11 // pred_check
          %p365 = pneg %p137
        $region26: #{tpu_custom_call.1} parent=11 // pred_check_branch
          %367 = sbr.rel (%p365) target = $region28
        $region27: #{tpu_custom_call.1} parent=11 // pred_region
          %369 = vsyncadd [#allocation9], 0
          %s370 = sshll.u32 %s4, 4
          %s371 = int_to_ptr.hbm [resolvable:$true] %s370
          %s372 = sshll.u32 [#allocation10], 4
          %s373 = int_to_ptr.vmem [resolvable:$true] %s372
          %378 = dma.hbm_to_vmem [thread:$0]  %s371, 512, %s373, [#allocation9], 128, 128, 8
        $region28: #{tpu_custom_call.1} parent=11 // pred_fallthru
          _
        // Predicated region
        $region29: #{tpu_custom_call.1} parent=11 // pred_check
          %p379 = pneg %p158
        $region30: #{tpu_custom_call.1} parent=11 // pred_check_branch
          %381 = sbr.rel (%p379) target = $region32
        $region31: #{tpu_custom_call.1} parent=11 // pred_region
          _
        $region32: #{tpu_custom_call.1} parent=11 // pred_fallthru
          _
        // Predicated region
        $region33: #{tpu_custom_call.1} parent=11 // pred_check
          %p382 = pneg %p179
        $region34: #{tpu_custom_call.1} parent=11 // pred_check_branch
          %384 = sbr.rel (%p382) target = $region36
        $region35: #{tpu_custom_call.1} parent=11 // pred_region
          _
        $region36: #{tpu_custom_call.1} parent=11 // pred_fallthru
          _
        // Predicated region
        $region37: #{tpu_custom_call.1} parent=11 // pred_check
          %p385 = pneg %p200
        $region38: #{tpu_custom_call.1} parent=11 // pred_check_branch
          %387 = sbr.rel (%p385) target = $region40
        $region39: #{tpu_custom_call.1} parent=11 // pred_region
          _
        $region40: #{tpu_custom_call.1} parent=11 // pred_fallthru
          _
        // Predicated region
        $region41: #{tpu_custom_call.1} parent=11 // pred_check
          %p388 = pneg %p221
        $region42: #{tpu_custom_call.1} parent=11 // pred_check_branch
          %390 = sbr.rel (%p388) target = $region44
        $region43: #{tpu_custom_call.1} parent=11 // pred_region
          %392 = vsyncadd [#allocation12], 0
          %s393 = sshll.u32 %s8, 4
          %s394 = int_to_ptr.hbm [resolvable:$true] %s393
          %s395 = sshll.u32 [#allocation11], 4
          %s396 = int_to_ptr.vmem [resolvable:$true] %s395
          %401 = dma.hbm_to_vmem [thread:$0]  %s394, 512, %s396, [#allocation12], 128, 128, 8
        $region44: #{tpu_custom_call.1} parent=11 // pred_fallthru
          _
        // Predicated region
        $region45: #{tpu_custom_call.1} parent=11 // pred_check
          %p402 = pneg %p242
        $region46: #{tpu_custom_call.1} parent=11 // pred_check_branch
          %404 = sbr.rel (%p402) target = $region48
        $region47: #{tpu_custom_call.1} parent=11 // pred_region
          _
        $region48: #{tpu_custom_call.1} parent=11 // pred_fallthru
          _
        // Predicated region
        $region49: #{tpu_custom_call.1} parent=11 // pred_check
          %p405 = pneg %p263
        $region50: #{tpu_custom_call.1} parent=11 // pred_check_branch
          %407 = sbr.rel (%p405) target = $region52
        $region51: #{tpu_custom_call.1} parent=11 // pred_region
          _
        $region52: #{tpu_custom_call.1} parent=11 // pred_fallthru
          _
        // Predicated region
        $region53: #{tpu_custom_call.1} parent=11 // pred_check
          %p408 = pneg %p284
        $region54: #{tpu_custom_call.1} parent=11 // pred_check_branch
          %410 = sbr.rel (%p408) target = $region56
        $region55: #{tpu_custom_call.1} parent=11 // pred_region
          _
        $region56: #{tpu_custom_call.1} parent=11 // pred_fallthru
          _
      $region12: #{tpu_custom_call.1} parent=5 // pred_fallthru
        _
      %p411 = scmp.lt.s32.totalorder %s27, 6
      // Predicated region
      $region57: #{tpu_custom_call.1} parent=5 // pred_check
        %p412 = pneg %p411
      $region58: #{tpu_custom_call.1} parent=5 // pred_check_branch
        %414 = sbr.rel (%p412) target = $region60
      $region59: #{tpu_custom_call.1} parent=5 // pred_region
        // Predicated region
        $region61: #{tpu_custom_call.1} parent=59 // pred_check
          %p415 = pneg %p47
        $region62: #{tpu_custom_call.1} parent=59 // pred_check_branch
          %417 = sbr.rel (%p415) target = $region64
        $region63: #{tpu_custom_call.1} parent=59 // pred_region
          %s418 = sand.u32 %s37, 1
          %s419 = scalar_lea.sflag [#allocation3], %s418
          %s420 = sand.u32 %s37, 1
          %s421 = smul.addr %s420, 16
          %s422 = scalar_lea.vmem [#allocation2], %s421
          %424 = vsyncadd %s419, 0
          %s425 = smul.addr %s27, 2
          %s426 = smul.addr %s425, 8
          %s427 = scalar_lea.hbm %s0, %s426
          %s428 = sshll.u32 %s427, 4
          %s429 = int_to_ptr.hbm [resolvable:$true] %s428
          %s430 = sshll.u32 %s422, 4
          %s431 = int_to_ptr.vmem [resolvable:$true] %s430
          %436 = dma.hbm_to_vmem [thread:$0]  %s429, 256, %s431, %s419, 128, 128, 8
        $region64: #{tpu_custom_call.1} parent=59 // pred_fallthru
          _
      $region60: #{tpu_custom_call.1} parent=5 // pred_fallthru
        _
      %p437 = scmp.le.s32.totalorder 1, %s27
      %p438 = scmp.lt.s32.totalorder %s27, 7
      %p439 = pnand %p437, %p438
      %p440 = pneg %p439
      // Predicated region
      $region65: #{tpu_custom_call.1} parent=5 // pred_check
        _
      $region66: #{tpu_custom_call.1} parent=5 // pred_check_branch
        %442 = sbr.rel (%p439) target = $region68
      $region67: #{tpu_custom_call.1} parent=5 // pred_region
        %s443 = ssub.s32 %s27, 1
        %s444 = sand.u32 %s40, 1
        %s445 = scalar_lea.sflag [#allocation3], %s444
        %s446 = sand.u32 %s40, 1
        %s447 = smul.addr %s446, 16
        %s448 = scalar_lea.vmem [#allocation2], %s447
        // Predicated region
        $region69: #{tpu_custom_call.1} parent=67 // pred_check
          %p449 = pneg %p53
        $region70: #{tpu_custom_call.1} parent=67 // pred_check_branch
          %451 = sbr.rel (%p449) target = $region72
        $region71: #{tpu_custom_call.1} parent=67 // pred_region
          %453 = dma.done %s445, 256
        $region72: #{tpu_custom_call.1} parent=67 // pred_fallthru
          _
        // Predicated region
        $region73: #{tpu_custom_call.1} parent=67 // pred_check
          %p454 = pneg %p74
        $region74: #{tpu_custom_call.1} parent=67 // pred_check_branch
          %456 = sbr.rel (%p454) target = $region76
        $region75: #{tpu_custom_call.1} parent=67 // pred_region
          %458 = dma.done [#allocation6], 256
        $region76: #{tpu_custom_call.1} parent=67 // pred_fallthru
          _
        // Predicated region
        $region77: #{tpu_custom_call.1} parent=67 // pred_check
          %p459 = pneg %p95
        $region78: #{tpu_custom_call.1} parent=67 // pred_check_branch
          %461 = sbr.rel (%p459) target = $region80
        $region79: #{tpu_custom_call.1} parent=67 // pred_region
          %463 = dma.done [#allocation6], 256
        $region80: #{tpu_custom_call.1} parent=67 // pred_fallthru
          _
        // Predicated region
        $region81: #{tpu_custom_call.1} parent=67 // pred_check
          %p464 = pneg %p116
        $region82: #{tpu_custom_call.1} parent=67 // pred_check_branch
          %466 = sbr.rel (%p464) target = $region84
        $region83: #{tpu_custom_call.1} parent=67 // pred_region
          %468 = dma.done [#allocation9], 64
        $region84: #{tpu_custom_call.1} parent=67 // pred_fallthru
          _
        // Predicated region
        $region85: #{tpu_custom_call.1} parent=67 // pred_check
          %p469 = pneg %p137
        $region86: #{tpu_custom_call.1} parent=67 // pred_check_branch
          %471 = sbr.rel (%p469) target = $region88
        $region87: #{tpu_custom_call.1} parent=67 // pred_region
          %473 = dma.done [#allocation9], 512
        $region88: #{tpu_custom_call.1} parent=67 // pred_fallthru
          _
        // Predicated region
        $region89: #{tpu_custom_call.1} parent=67 // pred_check
          %p474 = pneg %p221
        $region90: #{tpu_custom_call.1} parent=67 // pred_check_branch
          %476 = sbr.rel (%p474) target = $region92
        $region91: #{tpu_custom_call.1} parent=67 // pred_region
          %478 = dma.done [#allocation12], 512
        $region92: #{tpu_custom_call.1} parent=67 // pred_fallthru
          _
        %s479 = sand.u32 %s40, 1
        %s480 = scalar_lea.sflag [#allocation3], %s479
        %s481 = sand.u32 %s40, 1
        %s482 = smul.addr %s481, 16
        %s483 = scalar_lea.vmem [#allocation2], %s482
        %p484 = pneg %p53
        %p485 = pneg %p50
        %p486 = pneg %p74
        %p487 = pneg %p71
        %p488 = pneg %p95
        %p489 = pneg %p92
        %p490 = pneg %p116
        %p491 = pneg %p113
        %p492 = pneg %p137
        %p493 = pneg %p134
        %p494 = pneg %p158
        %p495 = pneg %p155
        %p496 = pneg %p179
        %p497 = pneg %p176
        %p498 = pneg %p200
        %p499 = pneg %p197
        %p500 = pneg %p221
        %p501 = pneg %p218
        %p502 = pneg %p242
        %p503 = pneg %p239
        %p504 = pneg %p263
        %p505 = pneg %p260
        %p506 = pneg %p284
        %p507 = pneg %p281
        %p508 = pneg %p310
        %p509 = pneg %p307
        %s510 = sand.u32 %s297, 1
        %s511 = scalar_lea.sflag [#allocation4], %s510
        %s512 = sand.u32 %s297, 1
        %s513 = smul.addr %s512, 4
        %s514 = scalar_lea.vmem [#allocation13], %s513
        %v515 = vld [vmem:[%s448] sm:$0xff]
        %v516 = vld [vmem:[%s448 + $0x8] sm:$0xff]
        %v517 = vld [vmem:[#allocation5] sm:$0xff]
        %v518 = vld [vmem:[#allocation5 + $0x8] sm:$0xff]
        %v519 = vld [vmem:[#allocation10] sm:$0xff]
        %v520 = vld [vmem:[#allocation10 + $0x8] sm:$0xff]
        %v521 = vld [vmem:[#allocation10 + $0x10] sm:$0xff]
        %v522 = vld [vmem:[#allocation10 + $0x18] sm:$0xff]
        %v523 = vld [vmem:[%s5] sm:$0x1]
        %v525 = vperm.slane %v523, 0
        %vm527 = vcmask 261120
        %v529 = vsel %vm527, %v515, 0
        %v532 = vsel %vm527, %v516, 0
        %534 = vmatpush.msra.mxu0 0.0
        %535 = vmatpush.msra.mxu0 0.0
        %536 = vmatpush.msra.mxu0 0.0
        %537 = vmatpush.msra.mxu0 0.0
        %538 = vmatpush.msra.mxu0 0.0
        %539 = vmatpush.msra.mxu0 0.0
        %540 = vmatpush.msra.mxu0 0.0
        %541 = vmatpush.msra.mxu0 0.0
        %542 = vmatpush.msra.mxu0 0.0
        %543 = vmatpush.msra.mxu0 0.0
        %544 = vmatpush.msra.mxu0 0.0
        %545 = vmatpush.msra.mxu0 0.0
        %546 = vmatpush.msra.mxu0 %v522
        %547 = vmatpush.msra.mxu0 %v521
        %548 = vmatpush.msra.mxu0 %v520
        %549 = vmatpush.msra.mxu0 %v519
        %550 = vmatmul.f32.gmra.mxu0 %v529
        %v551 = vpop.f32.mrf.mxu0
        %v552 = vadd.f32 %v525, %v551
        %553 = vmatmul.f32.gmra.mxu0 %v532
        %v554 = vpop.f32.mrf.mxu0
        %v555 = vadd.f32 %v525, %v554
        %556 = vdwg.mxu0
        %v558 = vsel %vm527, %v552, 0
        %v561 = vsel %vm527, %v555, 0
        %563 = vmatpush.xpose.msra.mxu0 0.0
        %564 = vmatpush.xpose.msra.mxu0 0.0
        %565 = vmatpush.xpose.msra.mxu0 0.0
        %566 = vmatpush.xpose.msra.mxu0 0.0
        %567 = vmatpush.xpose.msra.mxu0 0.0
        %568 = vmatpush.xpose.msra.mxu0 0.0
        %569 = vmatpush.xpose.msra.mxu0 0.0
        %570 = vmatpush.xpose.msra.mxu0 0.0
        %571 = vmatpush.xpose.msra.mxu0 0.0
        %572 = vmatpush.xpose.msra.mxu0 0.0
        %573 = vmatpush.xpose.msra.mxu0 0.0
        %574 = vmatpush.xpose.msra.mxu0 0.0
        %575 = vmatpush.xpose.msra.mxu0 0.0
        %576 = vmatpush.xpose.msra.mxu0 0.0
        %577 = vmatpush.xpose.msra.mxu0 %v561
        %578 = vmatpush.xpose.msra.mxu0 %v558
        %579 = vmatmul.f32.gmra.mxu0 %v558
        %v580 = vpop.f32.mrf.mxu0
        %v581 = vadd.f32 0.0, %v580
        %582 = vmatmul.f32.gmra.mxu0 %v561
        %v583 = vpop.f32.mrf.mxu0
        %v584 = vadd.f32 0.0, %v583
        %585 = vdwg.mxu0
        %v586 = vmul.f32 %v517, 1e+08
        %v587 = vmul.f32 %v518, 1e+08
        %v588 = vsub.f32 %v581, %v586
        %v589 = vsub.f32 %v584, %v587
        %vm590 = vcmp.ge.f32.partialorder %v588, 0.0
        %vm591 = vcmp.ge.f32.partialorder %v589, 0.0
        %v592 = vmul.f32 %v588, 0.01
        %v593 = vmul.f32 %v589, 0.01
        %v594 = vsel %vm590, %v588, %v592
        %v595 = vsel %vm591, %v589, %v593
        %vm596 = vcmask 130048
        %v597 = vsel %vm596, %v594, -inf
        %598 = vmax.xlane.f32.xlu0 %v597
        %v599 = vpop.xlane.xlu0 %598
        %v600 = vsel %vm596, %v595, -inf
        %601 = vmax.xlane.f32.xlu0 %v600
        %v602 = vpop.xlane.xlu0 %601
        %v603 = vsub.f32 %v594, %v599
        %v604 = vsub.f32 %v595, %v602
        %v605 = vmul.f32 %v603, 1.442695
        %v606 = vpow.pop %v605
        %v607 = vmul.f32 %v604, 1.442695
        %v608 = vpow.pop %v607
        %v609 = vsel %vm596, %v606, 0.0
        %610 = vadd.xlane.f32.xlu0 %v609
        %v611 = vpop.xlane.xlu0 %610
        %v612 = vsel %vm596, %v608, 0.0
        %613 = vadd.xlane.f32.xlu0 %v612
        %v614 = vpop.xlane.xlu0 %613
        %v615 = vrcp.pop %v611
        %v616 = vmul.f32 %v611, %v615
        %v617 = vsub.f32 1.0, %v616
        %v618 = vmul.f32 %v615, %v617
        %v619 = vadd.f32 %v615, %v618
        %vm620 = vweird.f32 %v611
        %vm621 = vweird.f32 %v615
        %vm622 = vmor %vm620, %vm621
        %v623 = vsel %vm622, %v615, %v619
        %v624 = vand.u32 2147483647, %v611
        %vm625 = vcmp.eq.f32.partialorder %v624, 8.507059e+37
        %v626 = vand.u32 %v611, 2147483648
        %v627 = vor.u32 1.1754944e-38, %v626
        %v628 = vsel %vm625, %v627, %v623
        %v629 = vmul.f32 %v606, %v628
        %v630 = vrcp.pop %v614
        %v631 = vmul.f32 %v614, %v630
        %v632 = vsub.f32 1.0, %v631
        %v633 = vmul.f32 %v630, %v632
        %v634 = vadd.f32 %v630, %v633
        %vm635 = vweird.f32 %v614
        %vm636 = vweird.f32 %v630
        %vm637 = vmor %vm635, %vm636
        %v638 = vsel %vm637, %v630, %v634
        %v639 = vand.u32 2147483647, %v614
        %vm640 = vcmp.eq.f32.partialorder %v639, 8.507059e+37
        %v641 = vand.u32 %v614, 2147483648
        %v642 = vor.u32 1.1754944e-38, %v641
        %v643 = vsel %vm640, %v642, %v638
        %v644 = vmul.f32 %v608, %v643
        %v645 = vadd.f32 %v629, %v517
        %v646 = vadd.f32 %v644, %v518
        %v647 = vld [vmem:[#allocation7] sm:$0xff]
        %v648 = vld [vmem:[#allocation7 + $0x8] sm:$0xff]
        %v649 = vmul.f32 %v645, %v647
        %v650 = vmul.f32 %v646, %v648
        %v651 = vld [vmem:[%s6] sm:$0x1]
        %v653 = vperm.slane %v651, 0
        %v655 = vmul.f32 %v515, %v653
        %v656 = vmul.f32 %v516, %v653
        %v657 = vld [vmem:[%s7] sm:$0x1]
        %v659 = vperm.slane %v657, 0
        %v661 = vadd.f32 %v655, %v659
        %v662 = vadd.f32 %v656, %v659
        %v664 = vsel %vm596, %v649, 0
        %v667 = vsel %vm596, %v650, 0
        %669 = vmatpush.msra.mxu0 0.0
        %670 = vmatpush.msra.mxu0 0.0
        %671 = vmatpush.msra.mxu0 0.0
        %672 = vmatpush.msra.mxu0 0.0
        %673 = vmatpush.msra.mxu0 0.0
        %674 = vmatpush.msra.mxu0 0.0
        %675 = vmatpush.msra.mxu0 0.0
        %676 = vmatpush.msra.mxu0 0.0
        %677 = vmatpush.msra.mxu0 0.0
        %678 = vmatpush.msra.mxu0 0.0
        %679 = vmatpush.msra.mxu0 0.0
        %680 = vmatpush.msra.mxu0 0.0
        %681 = vmatpush.msra.mxu0 0.0
        %682 = vmatpush.msra.mxu0 0.0
        %683 = vmatpush.msra.mxu0 %v662
        %684 = vmatpush.msra.mxu0 %v661
        %685 = vmatmul.f32.gmra.mxu0 %v664
        %v686 = vpop.f32.mrf.mxu0
        %v687 = vadd.f32 0.0, %v686
        %688 = vmatmul.f32.gmra.mxu0 %v667
        %v689 = vpop.f32.mrf.mxu0
        %v690 = vadd.f32 0.0, %v689
        %691 = vdwg.mxu0
        %v692 = vld [vmem:[#allocation11] sm:$0xff]
        %v693 = vld [vmem:[#allocation11 + $0x8] sm:$0xff]
        %v694 = vld [vmem:[#allocation11 + $0x10] sm:$0xff]
        %v695 = vld [vmem:[#allocation11 + $0x18] sm:$0xff]
        %v696 = vld [vmem:[%s9] sm:$0x1]
        %v698 = vperm.slane %v696, 0
        %v701 = vsel %vm527, %v687, 0
        %v704 = vsel %vm527, %v690, 0
        %706 = vmatpush.msra.mxu0 0.0
        %707 = vmatpush.msra.mxu0 0.0
        %708 = vmatpush.msra.mxu0 0.0
        %709 = vmatpush.msra.mxu0 0.0
        %710 = vmatpush.msra.mxu0 0.0
        %711 = vmatpush.msra.mxu0 0.0
        %712 = vmatpush.msra.mxu0 0.0
        %713 = vmatpush.msra.mxu0 0.0
        %714 = vmatpush.msra.mxu0 0.0
        %715 = vmatpush.msra.mxu0 0.0
        %716 = vmatpush.msra.mxu0 0.0
        %717 = vmatpush.msra.mxu0 0.0
        %718 = vmatpush.msra.mxu0 %v695
        %719 = vmatpush.msra.mxu0 %v694
        %720 = vmatpush.msra.mxu0 %v693
        %721 = vmatpush.msra.mxu0 %v692
        %722 = vmatmul.f32.gmra.mxu0 %v701
        %v723 = vpop.f32.mrf.mxu0
        %v724 = vadd.f32 %v698, %v723
        %725 = vmatmul.f32.gmra.mxu0 %v704
        %v726 = vpop.f32.mrf.mxu0
        %v727 = vadd.f32 %v698, %v726
        %728 = vdwg.mxu0
        %v729 = vld [vmem:[%s10] sm:$0x1]
        %v731 = vperm.slane %v729, 0
        %v733 = vmul.f32 %v724, %v731
        %v734 = vmul.f32 %v727, %v731
        %v735 = vld [vmem:[%s11] sm:$0x1]
        %v737 = vperm.slane %v735, 0
        %v739 = vadd.f32 %v733, %v737
        %v740 = vadd.f32 %v734, %v737
        %vm741 = vcmp.ge.f32.partialorder %v739, 0.0
        %vm742 = vcmp.ge.f32.partialorder %v740, 0.0
        %v743 = vmul.f32 %v739, 0.01
        %v744 = vmul.f32 %v740, 0.01
        %v745 = vsel %vm741, %v739, %v743
        %v746 = vsel %vm742, %v740, %v744
        %v747 = vld [vmem:[#allocation8] sm:$0xf]
        %v749 = vsel %vm596, %v747, 0
        %751 = vmatpush.msra.mxu0 0.0
        %752 = vmatpush.msra.mxu0 0.0
        %753 = vmatpush.msra.mxu0 0.0
        %754 = vmatpush.msra.mxu0 0.0
        %755 = vmatpush.msra.mxu0 0.0
        %756 = vmatpush.msra.mxu0 0.0
        %757 = vmatpush.msra.mxu0 0.0
        %758 = vmatpush.msra.mxu0 0.0
        %759 = vmatpush.msra.mxu0 0.0
        %760 = vmatpush.msra.mxu0 0.0
        %761 = vmatpush.msra.mxu0 0.0
        %762 = vmatpush.msra.mxu0 0.0
        %763 = vmatpush.msra.mxu0 0.0
        %764 = vmatpush.msra.mxu0 0.0
        %765 = vmatpush.msra.mxu0 %v746
        %766 = vmatpush.msra.mxu0 %v745
        %767 = vmatmul.f32.gmra.mxu0 %v749
        %v768 = vpop.f32.mrf.mxu0
        %v769 = vadd.f32 0.0, %v768
        %770 = vdwg.mxu0
        %vm771 = vcmask 257024
        %772 = vst.msk [vmem:[%s514] sm:$0xf] %vm771, %v769
        %s773 = sand.u32 %s297, 1
        %s774 = scalar_lea.sflag [#allocation4], %s773
        %s775 = sand.u32 %s297, 1
        %s776 = smul.addr %s775, 4
        %s777 = scalar_lea.vmem [#allocation13], %s776
        // Predicated region
        $region93: #{tpu_custom_call.1} parent=67 // pred_check
          %p778 = pneg %p307
        $region94: #{tpu_custom_call.1} parent=67 // pred_check_branch
          %780 = sbr.rel (%p778) target = $region96
        $region95: #{tpu_custom_call.1} parent=67 // pred_region
          %782 = vsyncadd %s774, 0
          %s783 = smul.addr %s32, 4
          %s784 = scalar_lea.hbm %s12, %s783
          %s786 = sshll.u32 %s777, 4
          %s787 = int_to_ptr.vmem [resolvable:$true] %s786
          %s788 = sshll.u32 %s784, 4
          %s789 = int_to_ptr.hbm [resolvable:$true] %s788
          %791 = dma.vmem_to_hbm [thread:$0]  %s787, 64, %s789, %s774
        $region96: #{tpu_custom_call.1} parent=67 // pred_fallthru
          _
      $region68: #{tpu_custom_call.1} parent=5 // pred_fallthru
        _
      %p792 = scmp.le.s32.totalorder 2, %s27
      // Predicated region
      $region97: #{tpu_custom_call.1} parent=5 // pred_check
        %p793 = pneg %p792
      $region98: #{tpu_custom_call.1} parent=5 // pred_check_branch
        %795 = sbr.rel (%p793) target = $region100
      $region99: #{tpu_custom_call.1} parent=5 // pred_region
        %s796 = ssub.s32 %s27, 2
        // Predicated region
        $region101: #{tpu_custom_call.1} parent=99 // pred_check
          %p797 = pneg %p313
        $region102: #{tpu_custom_call.1} parent=99 // pred_check_branch
          %799 = sbr.rel (%p797) target = $region104
        $region103: #{tpu_custom_call.1} parent=99 // pred_region
          %s800 = sand.u32 %s298, 1
          %s801 = scalar_lea.sflag [#allocation4], %s800
          %s802 = sand.u32 %s298, 1
          %s803 = smul.addr %s802, 4
          %s804 = scalar_lea.vmem [#allocation13], %s803
          %806 = dma.done %s801, 64
        $region104: #{tpu_custom_call.1} parent=99 // pred_fallthru
          _
      $region100: #{tpu_custom_call.1} parent=5 // pred_fallthru
        _
    $region6: #{tpu_custom_call.1} parent=1 // loop_footer
      %s31 = sadd.s32 1, %s27
    $region7: #{tpu_custom_call.1} parent=1 // loop_footer_branch
      %26 = sbr.rel target = $region3
    $region8: #{tpu_custom_call.1} parent=1 // loop_exit
      _
    %807 = vsyncpa [#allocation3], 1
    %s808 = scalar_lea.sflag [#allocation3], 1
    %809 = vsyncpa %s808, 1
    %810 = vsyncpa [#allocation6], 1
    %811 = vsyncpa [#allocation9], 1
    %812 = vsyncpa [#allocation12], 1
    %813 = vsyncpa [#allocation4], 1
    %s814 = scalar_lea.sflag [#allocation4], 1
    %815 = vsyncpa %s814, 1

</llo_original>
